<compile_context>
chip_gen: v6e
topology: v6e:2x2x1
jax: 0.10.0
libtpu: 0.0.40
codegen_flags: <defaults>
</compile_context>

<pallas_src>
import jax
import jax.numpy as jnp
from jax import lax
from jax.experimental import pallas as pl
from jax.experimental.pallas import tpu as pltpu


def _attention_kernel(q_ref, k_ref, v_ref, o_ref):
    # Channel-major blocks: q [1, C, TQ], k/v [1, C, S], o [1, C, TQ].
    q = q_ref[0]  # [C, TQ]   native dtype -> bf16 MXU path when inputs are bf16
    k = k_ref[0]  # [C, S]
    v = v_ref[0]  # [C, S]

    # Transposed scores st[s, t] = sum_c k[c, s] * q[c, t]   (MXU, f32 accumulate)
    st = lax.dot_general(k, q, (((0,), (0,)), ((), ())),
                         preferred_element_type=jnp.float32)           # [S, TQ]

    # Max-stabilized softmax over the key axis (axis 0 here); reductions land
    # in [1, TQ], which broadcasts directly against the [C, TQ] output tile.
    m = jnp.max(st, axis=0, keepdims=True)                             # [1, TQ]
    p = jnp.exp(st - m)                                                # [S, TQ]
    denom = jnp.sum(p, axis=0, keepdims=True)                          # [1, TQ]

    # Unnormalized PV matmul, channel-major output.
    o = lax.dot_general(v, p.astype(v.dtype), (((1,), (0,)), ((), ())),
                        preferred_element_type=jnp.float32)            # [C, TQ]

    # Normalize after the matmul: scale a [C, TQ] tile instead of [S, TQ];
    # the approximate reciprocal runs on the otherwise-idle EUP slot.
    o_ref[0] = (o * pl.reciprocal(denom, approx=True)).astype(o_ref.dtype)


def _vmem_capacity_bytes():
    try:
        return int(pltpu.get_tpu_info().vmem_capacity_bytes)
    except Exception:
        return 64 * 1024 * 1024  # v7x per-TC physical size: safe floor everywhere


def _step_vmem_bytes(tq, S, C, itemsize):
    kv = 2 * 2 * C * S * itemsize      # K and V blocks, double-buffered
    qo = 2 * 2 * C * tq * itemsize     # Q and output tiles, double-buffered
    tmp = 3 * tq * S * 4               # f32 score/exp temporaries + slack
    return kv + qo + tmp


def _choose_q_tile(S, C, itemsize, budget):
    # Query tiles must be lane-aligned (multiple of 128) or the full extent.
    if _step_vmem_bytes(S, S, C, itemsize) <= budget:
        return S
    for t in (2048, 1024, 512, 256, 128):
        if S % t == 0 and _step_vmem_bytes(t, S, C, itemsize) <= budget:
            return t
    for t in (128, 256, 512, 1024, 2048):
        if S % t == 0:
            return t
    # TODO(synk): add an online-softmax KV-tile axis so VMEM stops scaling with
    # S when even the smallest aligned query tile overflows the budget.
    return S


def self_attention_forward(query, key, value):
    """query [N,C,H,W], key/value [N,K,C,H,W] -> [N,K,C,H,W] (PyTorch semantics)."""
    N, K, C, H, W = key.shape
    S = H * W
    B = N * K
    itemsize = jnp.dtype(query.dtype).itemsize

    # Zero-copy layout: keep channel-major, just flatten (N, K) and (H, W).
    q = query.reshape(N, C, S)
    k = key.reshape(B, C, S)
    v = value.reshape(B, C, S)

    cap = _vmem_capacity_bytes()
    tq = _choose_q_tile(S, C, itemsize, budget=int(cap * 0.6))
    n_qt = S // tq
    vmem_limit = int(min(cap * 0.8,
                         max(_step_vmem_bytes(tq, S, C, itemsize) + (4 << 20),
                             32 << 20)))

    cost = pl.CostEstimate(
        flops=4 * B * S * S * C,                 # QK^T and PV matmuls
        transcendentals=B * S * S,               # softmax exp
        bytes_accessed=itemsize * (N * S * C              # Q (resident across K)
                                   + n_qt * 2 * B * S * C  # K, V (per q tile)
                                   + B * S * C),            # output
    )

    # TODO(synk): pack several (n, k) samples per grid step when S*C is tiny to
    # amortize the ~0.35 us fixed per-step overhead.
    out = pl.pallas_call(
        _attention_kernel,
        out_shape=jax.ShapeDtypeStruct((B, C, S), query.dtype),
        grid_spec=pltpu.PrefetchScalarGridSpec(
            num_scalar_prefetch=0,
            # K-replica axis innermost: the Q index_map ignores kk, so the query
            # tile stays VMEM-resident across the K replicas of each sample.
            grid=(N, n_qt, K),
            in_specs=[
                pl.BlockSpec((1, C, tq), lambda n, qi, kk: (n, 0, qi)),
                pl.BlockSpec((1, C, S), lambda n, qi, kk: (n * K + kk, 0, 0)),
                pl.BlockSpec((1, C, S), lambda n, qi, kk: (n * K + kk, 0, 0)),
            ],
            out_specs=pl.BlockSpec((1, C, tq),
                                   lambda n, qi, kk: (n * K + kk, 0, qi)),
        ),
        compiler_params=pltpu.CompilerParams(
            dimension_semantics=("parallel", "parallel", "parallel"),
            vmem_limit_bytes=vmem_limit,
        ),
        cost_estimate=cost,
    )(q, k, v)

    # Zero-copy back to the PyTorch output layout [N, K, C, H, W].
    return out.reshape(N, K, C, H, W)


def reference_forward(query, key, value):
    # Pure-JAX (non-Pallas) reference matching the PyTorch forward.
    N, K, C, H, W = key.shape
    S = H * W
    q = jnp.transpose(query, (0, 2, 3, 1)).reshape(N, S, C)
    q = jnp.repeat(q, K, axis=0)                                 # repeat_interleave
    k = jnp.transpose(key, (0, 1, 3, 4, 2)).reshape(N * K, S, C)
    v = jnp.transpose(value, (0, 1, 3, 4, 2)).reshape(N * K, S, C)
    corr = jnp.einsum('bqc,bkc->bqk', q, k)
    norm = jax.nn.softmax(corr, axis=2)
    out = jnp.einsum('bqk,bkc->bqc', norm, v)
    return jnp.transpose(out, (0, 2, 1)).reshape(N, K, C, H, W)


if __name__ == "__main__":
    N, K, C, H, W = 2, 3, 4, 8, 8
    root = jax.random.PRNGKey(0)
    kq, kk, kv = jax.random.split(root, 3)
    query = jax.random.normal(kq, (N, C, H, W), dtype=jnp.float32)
    key = jax.random.normal(kk, (N, K, C, H, W), dtype=jnp.float32)
    value = jax.random.normal(kv, (N, K, C, H, W), dtype=jnp.float32)

    out = jax.block_until_ready(self_attention_forward(query, key, value))

    ref = reference_forward(query, key, value)
    assert out.shape == (N, K, C, H, W), out.shape
    err = float(jnp.max(jnp.abs(out - ref)))
    # Approximate (EUP) reciprocal in the normalization -> allow small slack.
    assert err < 1e-2, f"max abs diff {err}"
    print("KERNEL_OK")
</pallas_src>

<mosaic_0001>
module attributes {stable_mosaic.version = 11 : i64} {
  func.func @_attention_kernel(%arg0: i32, %arg1: i32, %arg2: i32, %arg3: memref<1x4x64xf32, #tpu.memory_space<vmem>>, %arg4: memref<1x4x64xf32, #tpu.memory_space<vmem>>, %arg5: memref<1x4x64xf32, #tpu.memory_space<vmem>>, %arg6: memref<1x4x64xf32, #tpu.memory_space<vmem>>) attributes {dimension_semantics = [#tpu.dimension_semantics<parallel>, #tpu.dimension_semantics<parallel>, #tpu.dimension_semantics<parallel>], iteration_bounds = array<i64: 2, 1, 3>, scalar_prefetch = 0 : i64, scratch_operands = 0 : i64, tpu.core_type = #tpu.core_type<tc>, window_params = [{transform_indices = @transform_0, window_bounds = array<i64: 1, 4, 64>}, {transform_indices = @transform_1, window_bounds = array<i64: 1, 4, 64>}, {transform_indices = @transform_2, window_bounds = array<i64: 1, 4, 64>}, {transform_indices = @transform_3, window_bounds = array<i64: 1, 4, 64>}]} {
    %c0 = arith.constant 0 : index
    %c0_0 = arith.constant 0 : index
    %c0_1 = arith.constant 0 : index
    %0 = vector.load %arg3[%c0, %c0_0, %c0_1] : memref<1x4x64xf32, #tpu.memory_space<vmem>>, vector<1x4x64xf32>
    %1 = vector.shape_cast %0 : vector<1x4x64xf32> to vector<4x64xf32>
    %c0_2 = arith.constant 0 : index
    %c0_3 = arith.constant 0 : index
    %c0_4 = arith.constant 0 : index
    %2 = vector.load %arg4[%c0_2, %c0_3, %c0_4] : memref<1x4x64xf32, #tpu.memory_space<vmem>>, vector<1x4x64xf32>
    %3 = vector.shape_cast %2 : vector<1x4x64xf32> to vector<4x64xf32>
    %c0_5 = arith.constant 0 : index
    %c0_6 = arith.constant 0 : index
    %c0_7 = arith.constant 0 : index
    %4 = vector.load %arg5[%c0_5, %c0_6, %c0_7] : memref<1x4x64xf32, #tpu.memory_space<vmem>>, vector<1x4x64xf32>
    %5 = vector.shape_cast %4 : vector<1x4x64xf32> to vector<4x64xf32>
    %cst = arith.constant dense<0.000000e+00> : vector<64x64xf32>
    %6 = tpu.matmul %3, %1, %cst {dimension_numbers = #tpu.dot_dimension_numbers<[0], [0], [1], [1], [0, 1, 1, 1], [], []>} : vector<4x64xf32>, vector<4x64xf32>, vector<64x64xf32> -> vector<64x64xf32>
    %cst_8 = arith.constant dense<0xFF800000> : vector<64xf32>
    %7 = vector.multi_reduction <maximumf>, %6, %cst_8 [0] : vector<64x64xf32> to vector<64xf32>
    %8 = vector.shape_cast %7 : vector<64xf32> to vector<1x64xf32>
    %9 = vector.broadcast %8 : vector<1x64xf32> to vector<64x64xf32>
    %10 = arith.subf %6, %9 : vector<64x64xf32>
    %11 = math.exp %10 : vector<64x64xf32>
    %cst_9 = arith.constant dense<0.000000e+00> : vector<64xf32>
    %12 = vector.multi_reduction <add>, %11, %cst_9 [0] : vector<64x64xf32> to vector<64xf32>
    %13 = vector.shape_cast %12 : vector<64xf32> to vector<1x64xf32>
    %cst_10 = arith.constant dense<0.000000e+00> : vector<4x64xf32>
    %14 = tpu.matmul %5, %11, %cst_10 {dimension_numbers = #tpu.dot_dimension_numbers<[1], [0], [0], [1], [0, 0, 1, 1], [], []>} : vector<4x64xf32>, vector<64x64xf32>, vector<4x64xf32> -> vector<4x64xf32>
    %15 = tpu.reciprocal %13 {approx = true} : vector<1x64xf32> -> vector<1x64xf32>
    %16 = vector.broadcast %15 : vector<1x64xf32> to vector<4x64xf32>
    %17 = arith.mulf %14, %16 : vector<4x64xf32>
    %c0_11 = arith.constant 0 : index
    %c0_12 = arith.constant 0 : index
    %c0_13 = arith.constant 0 : index
    %18 = vector.load %arg6[%c0_11, %c0_12, %c0_13] : memref<1x4x64xf32, #tpu.memory_space<vmem>>, vector<1x4x64xf32>
    %19 = vector.shape_cast %18 : vector<1x4x64xf32> to vector<4x64xf32>
    %20 = vector.shape_cast %17 : vector<4x64xf32> to vector<1x4x64xf32>
    tpu.vector_store %arg6[%c0_11, %c0_12, %c0_13], %20 {strides = array<i32>} : memref<1x4x64xf32, #tpu.memory_space<vmem>>, vector<1x4x64xf32>,
    return
  }
  func.func @transform_0(%arg0: i32, %arg1: i32, %arg2: i32) -> (i32, i32, i32) {
    %c0_i32 = arith.constant 0 : i32
    %c0_i32_0 = arith.constant 0 : i32
    return %arg0, %c0_i32, %arg1 : i32, i32, i32
  }
  func.func @transform_1(%arg0: i32, %arg1: i32, %arg2: i32) -> (i32, i32, i32) {
    %c3_i32 = arith.constant 3 : i32
    %0 = arith.muli %arg0, %c3_i32 : i32
    %1 = arith.addi %0, %arg2 : i32
    %c0_i32 = arith.constant 0 : i32
    %c0_i32_0 = arith.constant 0 : i32
    %c0_i32_1 = arith.constant 0 : i32
    return %1, %c0_i32, %c0_i32_0 : i32, i32, i32
  }
  func.func @transform_2(%arg0: i32, %arg1: i32, %arg2: i32) -> (i32, i32, i32) {
    %c3_i32 = arith.constant 3 : i32
    %0 = arith.muli %arg0, %c3_i32 : i32
    %1 = arith.addi %0, %arg2 : i32
    %c0_i32 = arith.constant 0 : i32
    %c0_i32_0 = arith.constant 0 : i32
    %c0_i32_1 = arith.constant 0 : i32
    return %1, %c0_i32, %c0_i32_0 : i32, i32, i32
  }
  func.func @transform_3(%arg0: i32, %arg1: i32, %arg2: i32) -> (i32, i32, i32) {
    %c3_i32 = arith.constant 3 : i32
    %0 = arith.muli %arg0, %c3_i32 : i32
    %1 = arith.addi %0, %arg2 : i32
    %c0_i32 = arith.constant 0 : i32
    %c0_i32_0 = arith.constant 0 : i32
    return %1, %c0_i32, %arg1 : i32, i32, i32
  }
}

</mosaic_0001>

<llo_original>
// kernel: tpu_custom_call.1
$region0: #{tpu_custom_call.1}
  #allocation0 [shape = 'u32[]', space=smem, size = 0x4, offset = 0x4, fixed_abs, tag = 'smem constant byte address 0x4 - core index']
  #allocation1 [shape = 'u32[144,128]{1,0:T(1,128)}', space=vmem, size = 0x12000, scoped, tag = 'internal scratch']
  %s0 = inlined_call_operand.hbm [shape: f32[2,4,64], index: 0, kind: input, shape index: {}]
  %s1 = inlined_call_operand.hbm [shape: f32[6,4,64], index: 1, kind: input, shape index: {}]
  %s2 = inlined_call_operand.hbm [shape: f32[6,4,64], index: 2, kind: input, shape index: {}]
  %s3 = inlined_call_operand.hbm [shape: f32[6,4,64], index: 3, kind: output, shape index: {}]
  %s4 = sld [smem:[#allocation0]]
  $region57: #{tpu_custom_call.1} parent=0
    _
  %s6 = ssub.s32 1, %s4
  %s7 = scalar_select 0, %s6, %s4
  $region1: #{tpu_custom_call.1} parent=0
    #allocation2 [shape = 'u8[4096]{0}', space=vmem, size = 0x1000, scoped, tag = 'input window, operand 0']
    #allocation3 [shape = 's32[2]{0}', space=sflag, size = 0x8, scoped, tag = 'scoped memory for tpu_custom_call.1']
    #allocation4 [shape = 's32[2]{0}', space=sflag, size = 0x8, scoped, tag = 'scoped memory for tpu_custom_call.1']
    #allocation5 [shape = 'u8[4096]{0}', space=vmem, size = 0x1000, scoped, tag = 'input window, operand 1']
    #allocation6 [shape = 's32[2]{0}', space=sflag, size = 0x8, scoped, tag = 'scoped memory for tpu_custom_call.1']
    #allocation7 [shape = 'u8[4096]{0}', space=vmem, size = 0x1000, scoped, tag = 'input window, operand 2']
    #allocation8 [shape = 'u8[4096]{0}', space=vmem, size = 0x1000, scoped, tag = 'output window, operand 0']
    %8 = vsyncpa [#allocation3], 0
    %s9 = scalar_lea.sflag [#allocation3], 1
    %10 = vsyncpa %s9, 0
    %11 = vsyncpa [#allocation6], 0
    %s12 = scalar_lea.sflag [#allocation6], 1
    %13 = vsyncpa %s12, 0
    %14 = vsyncpa [#allocation4], 0
    %s15 = scalar_lea.sflag [#allocation4], 1
    %16 = vsyncpa %s15, 0
    loop: start=0, step=1, limit=8
    $region2: #{tpu_custom_call.1} parent=1 // loop_pre_header
      _
    $region3: #{tpu_custom_call.1} parent=1 // loop_header
      %s18 = sphi 0, %s22
      %p19 = scmp.ge.s32.totalorder %s18, 8
      %s25 = sphi 0, %s44
      %s26 = sphi 0, %s40
      %s27 = sphi 0, %s36
      %s28 = sphi 0, %s25
      %s29 = sphi 0, %s26
      %s30 = sphi 0, %s27
      %s31 = sphi 0, %s28
      %s32 = sphi 0, %s29
      %s33 = sphi 0, %s30
      %s49 = sphi 0, %s51
      %s52 = sphi 0, %s49
      %s53 = sphi 0, %s52
      %s69 = sphi 0, %s53
      %s79 = sphi 0, %s81
      %s82 = sphi 0, %s79
      %s83 = sphi 0, %s82
      %s99 = sphi 0, %s83
      %s109 = sphi 0, %s111
      %s112 = sphi 0, %s109
      %s113 = sphi 0, %s112
      %s129 = sphi 0, %s113
      %s141 = sphi 0, %s143
      %s144 = sphi 0, %s141
      %s145 = sphi 0, %s144
      %s161 = sphi 0, %s145
    $region4: #{tpu_custom_call.1} parent=1 // loop_header_branch
      %21 = sbr.rel (%p19) target = $region8
    $region5: #{tpu_custom_call.1} parent=1 // loop_body
      %s23 = ssub.s32 %s18, 1
      %s24 = ssub.s32 %s18, 2
      %s34 = sadd.s32 1, %s27
      %p35 = scmp.ge.s32.totalorder %s34, 3
      %s36 = scalar_select %p35, 0, %s34
      %s37 = sadd.s32 1, %s26
      %s38 = scalar_select %p35, %s37, %s26
      %p39 = scmp.ge.s32.totalorder %s38, 1
      %s40 = scalar_select %p39, 0, %s38
      %s41 = sadd.s32 1, %s25
      %s42 = scalar_select %p39, %s41, %s25
      %p43 = scmp.ge.s32.totalorder %s42, 2
      %s44 = scalar_select %p43, 0, %s42
      %s45 = ssub.s32 %s25, %s44
      %s46 = ssub.s32 %s26, %s40
      %s47 = sor.u32 %s45, %s46
      %p48 = scmp.eq.s32.totalorder %s47, 0
      %s50 = sadd.s32 %s49, 1
      %s51 = scalar_select %p48, %s49, %s50
      %p54 = pneg %p48
      %p55 = scmp.eq.s32.totalorder %s18, 5
      %p56 = por %p54, %p55
      %p57 = scmp.ne.s32.totalorder %s49, %s52
      %p58 = scmp.eq.s32.totalorder %s18, 0
      %p59 = por %p57, %p58
      %p60 = scmp.ne.s32.totalorder %s49, %s52
      %p61 = scmp.eq.s32.totalorder %s23, 5
      %p62 = por %p60, %p61
      %p63 = scmp.ne.s32.totalorder %s52, %s53
      %p64 = scmp.eq.s32.totalorder %s23, 0
      %p65 = por %p63, %p64
      %p66 = scmp.ne.s32.totalorder %s52, %s53
      %p67 = scmp.eq.s32.totalorder %s24, 5
      %p68 = por %p66, %p67
      %p70 = scmp.ne.s32.totalorder %s53, %s69
      %p71 = scmp.eq.s32.totalorder %s24, 0
      %p72 = por %p70, %p71
      %s73 = smul.u32 %s25, 3
      %s74 = sadd.s32 %s73, %s27
      %s75 = smul.u32 %s44, 3
      %s76 = sadd.s32 %s75, %s36
      %s77 = ssub.s32 %s74, %s76
      %p78 = scmp.eq.s32.totalorder %s77, 0
      %s80 = sadd.s32 %s79, 1
      %s81 = scalar_select %p78, %s79, %s80
      %p84 = pneg %p78
      %p85 = scmp.eq.s32.totalorder %s18, 5
      %p86 = por %p84, %p85
      %p87 = scmp.ne.s32.totalorder %s79, %s82
      %p88 = scmp.eq.s32.totalorder %s18, 0
      %p89 = por %p87, %p88
      %p90 = scmp.ne.s32.totalorder %s79, %s82
      %p91 = scmp.eq.s32.totalorder %s23, 5
      %p92 = por %p90, %p91
      %p93 = scmp.ne.s32.totalorder %s82, %s83
      %p94 = scmp.eq.s32.totalorder %s23, 0
      %p95 = por %p93, %p94
      %p96 = scmp.ne.s32.totalorder %s82, %s83
      %p97 = scmp.eq.s32.totalorder %s24, 5
      %p98 = por %p96, %p97
      %p100 = scmp.ne.s32.totalorder %s83, %s99
      %p101 = scmp.eq.s32.totalorder %s24, 0
      %p102 = por %p100, %p101
      %s103 = smul.u32 %s25, 3
      %s104 = sadd.s32 %s103, %s27
      %s105 = smul.u32 %s44, 3
      %s106 = sadd.s32 %s105, %s36
      %s107 = ssub.s32 %s104, %s106
      %p108 = scmp.eq.s32.totalorder %s107, 0
      %s110 = sadd.s32 %s109, 1
      %s111 = scalar_select %p108, %s109, %s110
      %p114 = pneg %p108
      %p115 = scmp.eq.s32.totalorder %s18, 5
      %p116 = por %p114, %p115
      %p117 = scmp.ne.s32.totalorder %s109, %s112
      %p118 = scmp.eq.s32.totalorder %s18, 0
      %p119 = por %p117, %p118
      %p120 = scmp.ne.s32.totalorder %s109, %s112
      %p121 = scmp.eq.s32.totalorder %s23, 5
      %p122 = por %p120, %p121
      %p123 = scmp.ne.s32.totalorder %s112, %s113
      %p124 = scmp.eq.s32.totalorder %s23, 0
      %p125 = por %p123, %p124
      %p126 = scmp.ne.s32.totalorder %s112, %s113
      %p127 = scmp.eq.s32.totalorder %s24, 5
      %p128 = por %p126, %p127
      %p130 = scmp.ne.s32.totalorder %s113, %s129
      %p131 = scmp.eq.s32.totalorder %s24, 0
      %p132 = por %p130, %p131
      %s133 = smul.u32 %s25, 3
      %s134 = sadd.s32 %s133, %s27
      %s135 = smul.u32 %s44, 3
      %s136 = sadd.s32 %s135, %s36
      %s137 = ssub.s32 %s134, %s136
      %s138 = ssub.s32 %s26, %s40
      %s139 = sor.u32 %s137, %s138
      %p140 = scmp.eq.s32.totalorder %s139, 0
      %s142 = sadd.s32 %s141, 1
      %s143 = scalar_select %p140, %s141, %s142
      %p146 = pneg %p140
      %p147 = scmp.eq.s32.totalorder %s18, 5
      %p148 = por %p146, %p147
      %p149 = scmp.ne.s32.totalorder %s141, %s144
      %p150 = scmp.eq.s32.totalorder %s18, 0
      %p151 = por %p149, %p150
      %p152 = scmp.ne.s32.totalorder %s141, %s144
      %p153 = scmp.eq.s32.totalorder %s23, 5
      %p154 = por %p152, %p153
      %p155 = scmp.ne.s32.totalorder %s144, %s145
      %p156 = scmp.eq.s32.totalorder %s23, 0
      %p157 = por %p155, %p156
      %p158 = scmp.ne.s32.totalorder %s144, %s145
      %p159 = scmp.eq.s32.totalorder %s24, 5
      %p160 = por %p158, %p159
      %p162 = scmp.ne.s32.totalorder %s145, %s161
      %p163 = scmp.eq.s32.totalorder %s24, 0
      %p164 = por %p162, %p163
      %p165 = scmp.le.s32.totalorder 1, %s18
      %p166 = scmp.lt.s32.totalorder %s18, 7
      %p167 = pnand %p165, %p166
      %p168 = pneg %p167
      // Predicated region
      $region9: #{tpu_custom_call.1} parent=5 // pred_check
        _
      $region10: #{tpu_custom_call.1} parent=5 // pred_check_branch
        %170 = sbr.rel (%p167) target = $region12
      $region11: #{tpu_custom_call.1} parent=5 // pred_region
        %s171 = ssub.s32 %s18, 1
      $region12: #{tpu_custom_call.1} parent=5 // pred_fallthru
        _
      %p172 = scmp.lt.s32.totalorder %s18, 6
      // Predicated region
      $region13: #{tpu_custom_call.1} parent=5 // pred_check
        %p173 = pneg %p172
      $region14: #{tpu_custom_call.1} parent=5 // pred_check_branch
        %175 = sbr.rel (%p173) target = $region16
      $region15: #{tpu_custom_call.1} parent=5 // pred_region
        // Predicated region
        $region17: #{tpu_custom_call.1} parent=15 // pred_check
          %p176 = pneg %p59
        $region18: #{tpu_custom_call.1} parent=15 // pred_check_branch
          %178 = sbr.rel (%p176) target = $region20
        $region19: #{tpu_custom_call.1} parent=15 // pred_region
          %s179 = sand.u32 %s49, 1
          %s180 = scalar_lea.sflag [#allocation3], %s179
          %s181 = sand.u32 %s49, 1
          %s182 = smul.addr %s181, 4
          %s183 = scalar_lea.vmem [#allocation2], %s182
          %s185 = ssub.s32 64, 64
          %186 = vsyncadd %s180, %s185
          %s187 = sadd.s32 %s26, %s25
          %s188 = smul.addr %s187, 64
          %s189 = scalar_lea.hbm %s0, %s188
          %s191 = sshll.u32 %s183, 4
          %s192 = int_to_ptr.vmem [resolvable:$true] %s191
          %194 = dma.hbm_to_vmem [thread:$0]  %s189, 64, %s192, %s180
        $region20: #{tpu_custom_call.1} parent=15 // pred_fallthru
          _
        // Predicated region
        $region21: #{tpu_custom_call.1} parent=15 // pred_check
          %p195 = pneg %p89
        $region22: #{tpu_custom_call.1} parent=15 // pred_check_branch
          %197 = sbr.rel (%p195) target = $region24
        $region23: #{tpu_custom_call.1} parent=15 // pred_region
          %s198 = sand.u32 %s18, 1
          %s199 = scalar_lea.sflag [#allocation6], %s198
          %s200 = sand.u32 %s79, 1
          %s201 = smul.addr %s200, 4
          %s202 = scalar_lea.vmem [#allocation5], %s201
          %s203 = smul.u32 %s25, 3
          %s204 = sadd.s32 %s203, %s27
          %s206 = ssub.s32 64, 64
          %207 = vsyncadd %s199, %s206
          %s208 = smul.addr %s204, 64
          %s209 = scalar_lea.hbm %s1, %s208
          %s211 = sshll.u32 %s202, 4
          %s212 = int_to_ptr.vmem [resolvable:$true] %s211
          %214 = dma.hbm_to_vmem [thread:$0]  %s209, 64, %s212, %s199
        $region24: #{tpu_custom_call.1} parent=15 // pred_fallthru
          _
        // Predicated region
        $region25: #{tpu_custom_call.1} parent=15 // pred_check
          %p215 = pneg %p119
        $region26: #{tpu_custom_call.1} parent=15 // pred_check_branch
          %217 = sbr.rel (%p215) target = $region28
        $region27: #{tpu_custom_call.1} parent=15 // pred_region
          %s218 = sand.u32 %s18, 1
          %s219 = scalar_lea.sflag [#allocation6], %s218
          %s220 = sand.u32 %s109, 1
          %s221 = smul.addr %s220, 4
          %s222 = scalar_lea.vmem [#allocation7], %s221
          %s223 = smul.u32 %s25, 3
          %s224 = sadd.s32 %s223, %s27
          %s226 = ssub.s32 64, 64
          %227 = vsyncadd %s219, %s226
          %s228 = smul.addr %s224, 64
          %s229 = scalar_lea.hbm %s2, %s228
          %s231 = sshll.u32 %s222, 4
          %s232 = int_to_ptr.vmem [resolvable:$true] %s231
          %234 = dma.hbm_to_vmem [thread:$0]  %s229, 64, %s232, %s219
        $region28: #{tpu_custom_call.1} parent=15 // pred_fallthru
          _
      $region16: #{tpu_custom_call.1} parent=5 // pred_fallthru
        _
      %p235 = scmp.le.s32.totalorder 1, %s18
      %p236 = scmp.lt.s32.totalorder %s18, 7
      %p237 = pnand %p235, %p236
      %p238 = pneg %p237
      // Predicated region
      $region29: #{tpu_custom_call.1} parent=5 // pred_check
        _
      $region30: #{tpu_custom_call.1} parent=5 // pred_check_branch
        %240 = sbr.rel (%p237) target = $region32
      $region31: #{tpu_custom_call.1} parent=5 // pred_region
        %s241 = ssub.s32 %s18, 1
        %s242 = sand.u32 %s52, 1
        %s243 = scalar_lea.sflag [#allocation3], %s242
        %s244 = sand.u32 %s52, 1
        %s245 = smul.addr %s244, 4
        %s246 = scalar_lea.vmem [#allocation2], %s245
        // Predicated region
        $region33: #{tpu_custom_call.1} parent=31 // pred_check
          %p247 = pneg %p65
        $region34: #{tpu_custom_call.1} parent=31 // pred_check_branch
          %249 = sbr.rel (%p247) target = $region36
        $region35: #{tpu_custom_call.1} parent=31 // pred_region
          %250 = dma.done %s243, 64
        $region36: #{tpu_custom_call.1} parent=31 // pred_fallthru
          _
        %s251 = sand.u32 %s23, 1
        %s252 = scalar_lea.sflag [#allocation6], %s251
        %s253 = sand.u32 %s82, 1
        %s254 = smul.addr %s253, 4
        %s255 = scalar_lea.vmem [#allocation5], %s254
        // Predicated region
        $region37: #{tpu_custom_call.1} parent=31 // pred_check
          %p256 = pneg %p95
        $region38: #{tpu_custom_call.1} parent=31 // pred_check_branch
          %258 = sbr.rel (%p256) target = $region40
        $region39: #{tpu_custom_call.1} parent=31 // pred_region
          %259 = dma.done %s252, 64
        $region40: #{tpu_custom_call.1} parent=31 // pred_fallthru
          _
        %s260 = sand.u32 %s23, 1
        %s261 = scalar_lea.sflag [#allocation6], %s260
        %s262 = sand.u32 %s112, 1
        %s263 = smul.addr %s262, 4
        %s264 = scalar_lea.vmem [#allocation7], %s263
        // Predicated region
        $region41: #{tpu_custom_call.1} parent=31 // pred_check
          %p265 = pneg %p125
        $region42: #{tpu_custom_call.1} parent=31 // pred_check_branch
          %267 = sbr.rel (%p265) target = $region44
        $region43: #{tpu_custom_call.1} parent=31 // pred_region
          %268 = dma.done %s261, 64
        $region44: #{tpu_custom_call.1} parent=31 // pred_fallthru
          _
        %s269 = sand.u32 %s52, 1
        %s270 = scalar_lea.sflag [#allocation3], %s269
        %s271 = sand.u32 %s52, 1
        %s272 = smul.addr %s271, 4
        %s273 = scalar_lea.vmem [#allocation2], %s272
        %p274 = pneg %p65
        %p275 = pneg %p62
        %s276 = sand.u32 %s23, 1
        %s277 = scalar_lea.sflag [#allocation6], %s276
        %s278 = sand.u32 %s82, 1
        %s279 = smul.addr %s278, 4
        %s280 = scalar_lea.vmem [#allocation5], %s279
        %p281 = pneg %p95
        %p282 = pneg %p92
        %s283 = sand.u32 %s23, 1
        %s284 = scalar_lea.sflag [#allocation6], %s283
        %s285 = sand.u32 %s112, 1
        %s286 = smul.addr %s285, 4
        %s287 = scalar_lea.vmem [#allocation7], %s286
        %p288 = pneg %p125
        %p289 = pneg %p122
        %p290 = pneg %p157
        %p291 = pneg %p154
        %s292 = sand.u32 %s144, 1
        %s293 = scalar_lea.sflag [#allocation4], %s292
        %s294 = sand.u32 %s144, 1
        %s295 = smul.addr %s294, 4
        %s296 = scalar_lea.vmem [#allocation8], %s295
        %s297 = smul.u32 %s28, 3
        %s298 = sadd.s32 %s297, %s30
        %s299 = smul.u32 %s28, 3
        %s300 = sadd.s32 %s299, %s30
        %s301 = smul.u32 %s28, 3
        %s302 = sadd.s32 %s301, %s30
        %v303 = vld [vmem:[%s246] sm:$0xf]
        %v304 = vld [vmem:[%s255] sm:$0xf]
        %v305 = vld [vmem:[%s264] sm:$0xf]
        %306 = vxpose.xlu0.b32.start [1/16] %v304, 128
        %307 = vxpose.xlu0.b32.cont [2/16] 0.0, 128
        %308 = vxpose.xlu0.b32.cont [3/16] 0.0, 128
        %309 = vxpose.xlu0.b32.cont [4/16] 0.0, 128
        %310 = vxpose.xlu0.b32.cont [5/16] 0.0, 128
        %311 = vxpose.xlu0.b32.cont [6/16] 0.0, 128
        %312 = vxpose.xlu0.b32.cont [7/16] 0.0, 128
        %313 = vxpose.xlu0.b32.cont [8/16] 0.0, 128
        %314 = vxpose.xlu0.b32.cont [9/16] 0.0, 128
        %315 = vxpose.xlu0.b32.cont [10/16] 0.0, 128
        %316 = vxpose.xlu0.b32.cont [11/16] 0.0, 128
        %317 = vxpose.xlu0.b32.cont [12/16] 0.0, 128
        %318 = vxpose.xlu0.b32.cont [13/16] 0.0, 128
        %319 = vxpose.xlu0.b32.cont [14/16] 0.0, 128
        %320 = vxpose.xlu0.b32.cont [15/16] 0.0, 128
        %321 = vxpose.xlu0.b32.end [16/16] 0.0, 128
        %v322 = vpop.trf.xlu0
        %v323 = vpop.trf.xlu0
        %v324 = vpop.trf.xlu0
        %v325 = vpop.trf.xlu0
        %v326 = vpop.trf.xlu0
        %v327 = vpop.trf.xlu0
        %v328 = vpop.trf.xlu0
        %v329 = vpop.trf.xlu0
        %v330 = vpop.trf.xlu0
        %v331 = vpop.trf.xlu0
        %v332 = vpop.trf.xlu0
        %v333 = vpop.trf.xlu0
        %v334 = vpop.trf.xlu0
        %v335 = vpop.trf.xlu0
        %v336 = vpop.trf.xlu0
        %v337 = vpop.trf.xlu0
        %vm338 = vcmask 31744
        %v340 = vsel %vm338, %v322, 0
        %v343 = vsel %vm338, %v323, 0
        %v346 = vsel %vm338, %v324, 0
        %v349 = vsel %vm338, %v325, 0
        %v352 = vsel %vm338, %v326, 0
        %v355 = vsel %vm338, %v327, 0
        %v358 = vsel %vm338, %v328, 0
        %v361 = vsel %vm338, %v329, 0
        %vm363 = vcmask 1043456
        %v365 = vsel %vm363, %v303, 0
        %367 = vmatprep.subr.mxu0 0.0
        %368 = vmatpush1.msra.mxu0 0.0
        %369 = vmatprep.subr.mxu0 0.0
        %370 = vmatpush1.msra.mxu0 0.0
        %371 = vmatprep.subr.mxu0 0.0
        %372 = vmatpush1.msra.mxu0 0.0
        %373 = vmatprep.subr.mxu0 0.0
        %374 = vmatpush1.msra.mxu0 0.0
        %375 = vmatprep.subr.mxu0 0.0
        %376 = vmatpush1.msra.mxu0 0.0
        %377 = vmatprep.subr.mxu0 0.0
        %378 = vmatpush1.msra.mxu0 0.0
        %379 = vmatprep.subr.mxu0 0.0
        %380 = vmatpush1.msra.mxu0 0.0
        %381 = vmatprep.subr.mxu0 0.0
        %382 = vmatpush1.msra.mxu0 0.0
        %383 = vmatprep.subr.mxu0 0.0
        %384 = vmatpush1.msra.mxu0 0.0
        %385 = vmatprep.subr.mxu0 0.0
        %386 = vmatpush1.msra.mxu0 0.0
        %387 = vmatprep.subr.mxu0 0.0
        %388 = vmatpush1.msra.mxu0 0.0
        %389 = vmatprep.subr.mxu0 0.0
        %390 = vmatpush1.msra.mxu0 0.0
        %391 = vmatprep.subr.mxu0 0.0
        %392 = vmatpush1.msra.mxu0 0.0
        %393 = vmatprep.subr.mxu0 0.0
        %394 = vmatpush1.msra.mxu0 0.0
        %395 = vmatprep.subr.mxu0 0.0
        %396 = vmatpush1.msra.mxu0 0.0
        %397 = vmatprep.subr.mxu0 0.0
        %398 = vmatpush1.msra.mxu0 %v365
        %399 = vmatprep.subr.mxu0 0.0
        %400 = vmatpush2.msra.mxu0 0.0
        %401 = vmatprep.subr.mxu0 0.0
        %402 = vmatpush2.msra.mxu0 0.0
        %403 = vmatprep.subr.mxu0 0.0
        %404 = vmatpush2.msra.mxu0 0.0
        %405 = vmatprep.subr.mxu0 0.0
        %406 = vmatpush2.msra.mxu0 0.0
        %407 = vmatprep.subr.mxu0 0.0
        %408 = vmatpush2.msra.mxu0 0.0
        %409 = vmatprep.subr.mxu0 0.0
        %410 = vmatpush2.msra.mxu0 0.0
        %411 = vmatprep.subr.mxu0 0.0
        %412 = vmatpush2.msra.mxu0 0.0
        %413 = vmatprep.subr.mxu0 0.0
        %414 = vmatpush2.msra.mxu0 0.0
        %415 = vmatprep.subr.mxu0 0.0
        %416 = vmatpush2.msra.mxu0 0.0
        %417 = vmatprep.subr.mxu0 0.0
        %418 = vmatpush2.msra.mxu0 0.0
        %419 = vmatprep.subr.mxu0 0.0
        %420 = vmatpush2.msra.mxu0 0.0
        %421 = vmatprep.subr.mxu0 0.0
        %422 = vmatpush2.msra.mxu0 0.0
        %423 = vmatprep.subr.mxu0 0.0
        %424 = vmatpush2.msra.mxu0 0.0
        %425 = vmatprep.subr.mxu0 0.0
        %426 = vmatpush2.msra.mxu0 0.0
        %427 = vmatprep.subr.mxu0 0.0
        %428 = vmatpush2.msra.mxu0 0.0
        %429 = vmatprep.subr.mxu0 0.0
        %430 = vmatpush2.msra.mxu0 0.0
        %431 = vmatprep.mubr.f32.mxu0 0.0
        %432 = vmatmul.mubr.f32.gmra.mxu0 %v340
        %v433 = vpop.f32.mrf.mxu0
        %v434 = vadd.f32 0.0, %v433
        %v435 = vpop.f32.mrf.mxu0
        %436 = vmatprep.mubr.f32.mxu0 0.0
        %437 = vmatmul.mubr.f32.gmra.mxu0 %v343
        %v438 = vpop.f32.mrf.mxu0
        %v439 = vadd.f32 0.0, %v438
        %v440 = vpop.f32.mrf.mxu0
        %441 = vmatprep.mubr.f32.mxu0 0.0
        %442 = vmatmul.mubr.f32.gmra.mxu0 %v346
        %v443 = vpop.f32.mrf.mxu0
        %v444 = vadd.f32 0.0, %v443
        %v445 = vpop.f32.mrf.mxu0
        %446 = vmatprep.mubr.f32.mxu0 0.0
        %447 = vmatmul.mubr.f32.gmra.mxu0 %v349
        %v448 = vpop.f32.mrf.mxu0
        %v449 = vadd.f32 0.0, %v448
        %v450 = vpop.f32.mrf.mxu0
        %451 = vmatprep.mubr.f32.mxu0 0.0
        %452 = vmatmul.mubr.f32.gmra.mxu0 %v352
        %v453 = vpop.f32.mrf.mxu0
        %v454 = vadd.f32 0.0, %v453
        %v455 = vpop.f32.mrf.mxu0
        %456 = vmatprep.mubr.f32.mxu0 0.0
        %457 = vmatmul.mubr.f32.gmra.mxu0 %v355
        %v458 = vpop.f32.mrf.mxu0
        %v459 = vadd.f32 0.0, %v458
        %v460 = vpop.f32.mrf.mxu0
        %461 = vmatprep.mubr.f32.mxu0 0.0
        %462 = vmatmul.mubr.f32.gmra.mxu0 %v358
        %v463 = vpop.f32.mrf.mxu0
        %v464 = vadd.f32 0.0, %v463
        %v465 = vpop.f32.mrf.mxu0
        %466 = vmatprep.mubr.f32.mxu0 0.0
        %467 = vmatmul.mubr.f32.gmra.mxu0 %v361
        %v468 = vpop.f32.mrf.mxu0
        %v469 = vadd.f32 0.0, %v468
        %v470 = vpop.f32.mrf.mxu0
        %471 = vdwg.mxu0
        %vm472 = vcmask 523264
        %v473 = vsel %vm472, %v434, -inf
        %v474 = vsel %vm472, %v439, -inf
        %v475 = vsel %vm472, %v444, -inf
        %v476 = vsel %vm472, %v449, -inf
        %v477 = vsel %vm472, %v454, -inf
        %v478 = vmax.f32 %v473, %v477
        %v479 = vsel %vm472, %v459, -inf
        %v480 = vmax.f32 %v474, %v479
        %v481 = vsel %vm472, %v464, -inf
        %v482 = vmax.f32 %v475, %v481
        %v483 = vsel %vm472, %v469, -inf
        %v484 = vmax.f32 %v476, %v483
        %v485 = vmax.f32 %v478, %v480
        %v486 = vmax.f32 %v482, %v484
        %v487 = vmax.f32 %v485, %v486
        %v488 = vrot.slane %v487, 4
        %v489 = vmax.f32 %v487, %v488
        %v490 = vrot.slane %v489, 2
        %v491 = vmax.f32 %v489, %v490
        %v492 = vrot.slane %v491, 1
        %v493 = vmax.f32 %v491, %v492
        %v494 = vsub.f32 %v434, %v493
        %v495 = vsub.f32 %v439, %v493
        %v496 = vsub.f32 %v444, %v493
        %v497 = vsub.f32 %v449, %v493
        %v498 = vsub.f32 %v454, %v493
        %v499 = vsub.f32 %v459, %v493
        %v500 = vsub.f32 %v464, %v493
        %v501 = vsub.f32 %v469, %v493
        %v502 = vmul.f32 %v494, 1.442695
        %v503 = vpow.pop %v502
        %v504 = vmul.f32 %v495, 1.442695
        %v505 = vpow.pop %v504
        %v506 = vmul.f32 %v496, 1.442695
        %v507 = vpow.pop %v506
        %v508 = vmul.f32 %v497, 1.442695
        %v509 = vpow.pop %v508
        %v510 = vmul.f32 %v498, 1.442695
        %v511 = vpow.pop %v510
        %v512 = vmul.f32 %v499, 1.442695
        %v513 = vpow.pop %v512
        %v514 = vmul.f32 %v500, 1.442695
        %v515 = vpow.pop %v514
        %v516 = vmul.f32 %v501, 1.442695
        %v517 = vpow.pop %v516
        %v518 = vsel %vm472, %v503, 0.0
        %v519 = vsel %vm472, %v505, 0.0
        %v520 = vadd.f32 %v518, %v519
        %v521 = vsel %vm472, %v507, 0.0
        %v522 = vadd.f32 %v520, %v521
        %v523 = vsel %vm472, %v509, 0.0
        %v524 = vadd.f32 %v522, %v523
        %v525 = vsel %vm472, %v511, 0.0
        %v526 = vadd.f32 %v524, %v525
        %v527 = vsel %vm472, %v513, 0.0
        %v528 = vadd.f32 %v526, %v527
        %v529 = vsel %vm472, %v515, 0.0
        %v530 = vadd.f32 %v528, %v529
        %v531 = vsel %vm472, %v517, 0.0
        %v532 = vadd.f32 %v530, %v531
        %v533 = vrot.slane %v532, 4
        %v534 = vadd.f32 %v532, %v533
        %v535 = vrot.slane %v534, 2
        %v536 = vadd.f32 %v534, %v535
        %v537 = vrot.slane %v536, 1
        %v538 = vadd.f32 %v536, %v537
        %v540 = vsel %vm472, %v305, 0
        %542 = vmatprep.subr.mxu0 0.0
        %543 = vmatpush1.msra.mxu0 0.0
        %544 = vmatprep.subr.mxu0 0.0
        %545 = vmatpush1.msra.mxu0 0.0
        %546 = vmatprep.subr.mxu0 0.0
        %547 = vmatpush1.msra.mxu0 0.0
        %548 = vmatprep.subr.mxu0 0.0
        %549 = vmatpush1.msra.mxu0 0.0
        %550 = vmatprep.subr.mxu0 0.0
        %551 = vmatpush1.msra.mxu0 0.0
        %552 = vmatprep.subr.mxu0 0.0
        %553 = vmatpush1.msra.mxu0 0.0
        %554 = vmatprep.subr.mxu0 0.0
        %555 = vmatpush1.msra.mxu0 0.0
        %556 = vmatprep.subr.mxu0 0.0
        %557 = vmatpush1.msra.mxu0 0.0
        %558 = vmatprep.subr.mxu0 0.0
        %559 = vmatpush1.msra.mxu0 %v517
        %560 = vmatprep.subr.mxu0 0.0
        %561 = vmatpush1.msra.mxu0 %v515
        %562 = vmatprep.subr.mxu0 0.0
        %563 = vmatpush1.msra.mxu0 %v513
        %564 = vmatprep.subr.mxu0 0.0
        %565 = vmatpush1.msra.mxu0 %v511
        %566 = vmatprep.subr.mxu0 0.0
        %567 = vmatpush1.msra.mxu0 %v509
        %568 = vmatprep.subr.mxu0 0.0
        %569 = vmatpush1.msra.mxu0 %v507
        %570 = vmatprep.subr.mxu0 0.0
        %571 = vmatpush1.msra.mxu0 %v505
        %572 = vmatprep.subr.mxu0 0.0
        %573 = vmatpush1.msra.mxu0 %v503
        %574 = vmatprep.subr.mxu0 0.0
        %575 = vmatpush2.msra.mxu0 0.0
        %576 = vmatprep.subr.mxu0 0.0
        %577 = vmatpush2.msra.mxu0 0.0
        %578 = vmatprep.subr.mxu0 0.0
        %579 = vmatpush2.msra.mxu0 0.0
        %580 = vmatprep.subr.mxu0 0.0
        %581 = vmatpush2.msra.mxu0 0.0
        %582 = vmatprep.subr.mxu0 0.0
        %583 = vmatpush2.msra.mxu0 0.0
        %584 = vmatprep.subr.mxu0 0.0
        %585 = vmatpush2.msra.mxu0 0.0
        %586 = vmatprep.subr.mxu0 0.0
        %587 = vmatpush2.msra.mxu0 0.0
        %588 = vmatprep.subr.mxu0 0.0
        %589 = vmatpush2.msra.mxu0 0.0
        %590 = vmatprep.subr.mxu0 0.0
        %591 = vmatpush2.msra.mxu0 0.0
        %592 = vmatprep.subr.mxu0 0.0
        %593 = vmatpush2.msra.mxu0 0.0
        %594 = vmatprep.subr.mxu0 0.0
        %595 = vmatpush2.msra.mxu0 0.0
        %596 = vmatprep.subr.mxu0 0.0
        %597 = vmatpush2.msra.mxu0 0.0
        %598 = vmatprep.subr.mxu0 0.0
        %599 = vmatpush2.msra.mxu0 0.0
        %600 = vmatprep.subr.mxu0 0.0
        %601 = vmatpush2.msra.mxu0 0.0
        %602 = vmatprep.subr.mxu0 0.0
        %603 = vmatpush2.msra.mxu0 0.0
        %604 = vmatprep.subr.mxu0 0.0
        %605 = vmatpush2.msra.mxu0 0.0
        %606 = vmatprep.mubr.f32.mxu0 0.0
        %607 = vmatmul.mubr.f32.gmra.mxu0 %v540
        %v608 = vpop.f32.mrf.mxu0
        %v609 = vadd.f32 0.0, %v608
        %v610 = vpop.f32.mrf.mxu0
        %611 = vdwg.mxu0
        %v612 = vrcp.pop %v538
        %v613 = vmul.f32 %v609, %v612
        %vm614 = vcmask 519168
        %615 = vst.msk [vmem:[%s296] sm:$0xf] %vm614, %v613
        %s616 = sand.u32 %s144, 1
        %s617 = scalar_lea.sflag [#allocation4], %s616
        %s618 = sand.u32 %s144, 1
        %s619 = smul.addr %s618, 4
        %s620 = scalar_lea.vmem [#allocation8], %s619
        // Predicated region
        $region45: #{tpu_custom_call.1} parent=31 // pred_check
          %p621 = pneg %p154
        $region46: #{tpu_custom_call.1} parent=31 // pred_check_branch
          %623 = sbr.rel (%p621) target = $region48
        $region47: #{tpu_custom_call.1} parent=31 // pred_region
          %s624 = smul.u32 %s28, 3
          %s625 = sadd.s32 %s624, %s30
          %s627 = ssub.s32 64, 64
          %628 = vsyncadd %s617, %s627
          %s629 = sadd.s32 %s29, %s625
          %s630 = smul.addr %s629, 64
          %s631 = scalar_lea.hbm %s3, %s630
          %s633 = sshll.u32 %s620, 4
          %s634 = int_to_ptr.vmem [resolvable:$true] %s633
          %636 = dma.vmem_to_hbm [thread:$0]  %s634, 64, %s631, %s617
        $region48: #{tpu_custom_call.1} parent=31 // pred_fallthru
          _
      $region32: #{tpu_custom_call.1} parent=5 // pred_fallthru
        _
      %p637 = scmp.le.s32.totalorder 2, %s18
      // Predicated region
      $region49: #{tpu_custom_call.1} parent=5 // pred_check
        %p638 = pneg %p637
      $region50: #{tpu_custom_call.1} parent=5 // pred_check_branch
        %640 = sbr.rel (%p638) target = $region52
      $region51: #{tpu_custom_call.1} parent=5 // pred_region
        %s641 = ssub.s32 %s18, 2
        // Predicated region
        $region53: #{tpu_custom_call.1} parent=51 // pred_check
          %p642 = pneg %p160
        $region54: #{tpu_custom_call.1} parent=51 // pred_check_branch
          %644 = sbr.rel (%p642) target = $region56
        $region55: #{tpu_custom_call.1} parent=51 // pred_region
          %s645 = sand.u32 %s145, 1
          %s646 = scalar_lea.sflag [#allocation4], %s645
          %s647 = sand.u32 %s145, 1
          %s648 = smul.addr %s647, 4
          %s649 = scalar_lea.vmem [#allocation8], %s648
          %650 = dma.done %s646, 64
        $region56: #{tpu_custom_call.1} parent=51 // pred_fallthru
          _
      $region52: #{tpu_custom_call.1} parent=5 // pred_fallthru
        _
    $region6: #{tpu_custom_call.1} parent=1 // loop_footer
      %s22 = sadd.s32 1, %s18
    $region7: #{tpu_custom_call.1} parent=1 // loop_footer_branch
      %17 = sbr.rel target = $region3
    $region8: #{tpu_custom_call.1} parent=1 // loop_exit
      _
    %651 = vsyncpa [#allocation3], 1
    %s652 = scalar_lea.sflag [#allocation3], 1
    %653 = vsyncpa %s652, 1
    %654 = vsyncpa [#allocation6], 1
    %s655 = scalar_lea.sflag [#allocation6], 1
    %656 = vsyncpa %s655, 1
    %657 = vsyncpa [#allocation4], 1
    %s658 = scalar_lea.sflag [#allocation4], 1
    %659 = vsyncpa %s658, 1

</llo_original>
